<compile_context>
chip_gen: v7x
topology: tpu7x:2x2x1
jax: 0.10.0
libtpu: 0.0.40
codegen_flags: <defaults>
</compile_context>

<pallas_src>
import math

import jax
import jax.numpy as jnp
from jax.experimental import pallas as pl
from jax.experimental.pallas import tpu as pltpu

_LANE = 128
_TB_MAX = 8192          # batch lanes per grid step (see header comment)
_SLAB_ROWS = 64         # packed-constant slab: (64, 128) f32 = 32 KiB


def _round_up(n, m):
    return ((n + m - 1) // m) * m


def _cdiv(a, b):
    return (a + b - 1) // b


def policy_net_kernel(x_ref, wb_ref, o_ref):
    """One batch tile.  x_ref: [tb, 4] (native layout), wb_ref: [64, 128] packed consts,
    o_ref: [1, tb] lane-dense output."""
    # Static views into the packed constant slab (VMEM-resident across all grid steps).
    w1 = wb_ref[0:24, 0:4]       # [24, 4]
    b1 = wb_ref[0:24, 4:5]       # [24, 1]
    w2 = wb_ref[24:60, 0:24]     # [36, 24]
    b2 = wb_ref[24:60, 24:25]    # [36, 1]
    w3 = wb_ref[0:1, 40:76]      # [1, 36]
    b3 = wb_ref[0:1, 76:77]      # [1, 1]

    # Linear(4, 24) + ReLU.  Contract the feature axis of BOTH operands (W @ X^T), so the
    # batch->lane transpose is folded into the MXU operand orientation and x needs no
    # HBM-side transpose.  Result is lane-dense [24, tb]; bias lane-broadcasts.
    h1 = jax.lax.dot_general(
        w1, x_ref[...], (((1,), (1,)), ((), ())),
        preferred_element_type=jnp.float32) + b1
    h1 = jnp.maximum(h1, 0.0)

    # Linear(24, 36) + ReLU      -> [36, tb]
    h2 = jnp.dot(w2, h1, preferred_element_type=jnp.float32) + b2
    h2 = jnp.maximum(h2, 0.0)

    # Linear(36, 1)              -> [1, tb]
    z = jnp.dot(w3, h2, preferred_element_type=jnp.float32) + b3

    # clamp(-10, 10) then sigmoid via tanh (single EUP op): sigmoid(z) = 0.5*(tanh(z/2)+1)
    z = jnp.clip(z, -10.0, 10.0)
    o_ref[...] = (0.5 * (jnp.tanh(0.5 * z) + 1.0)).astype(o_ref.dtype)


@jax.jit
def policy_net_forward(x, wb_slab):
    """x: [B, 4] float32 (native PyTorch layout); wb_slab: packed params from pack_params().
    Returns [B, 1] float32 sigmoid output."""
    B, F = x.shape
    if F != 4:
        raise ValueError(f"expected 4 input features, got {F}")
    if x.dtype != jnp.float32:
        x = x.astype(jnp.float32)

    # Tile: large enough to amortize ~0.35us/step overhead, small enough for VMEM with the
    # lane-padded [tb, 4] window, and split so the grid has >=2 steps whenever B > 128
    # (keeps both v7x TensorCores busy; harmless on single-TC v5e/v6e).
    b_ceil = _round_up(max(B, 1), _LANE)
    tb = min(_TB_MAX, _round_up(_cdiv(b_ceil, 2), _LANE))
    grid = (_cdiv(B, tb),)   # trailing block may be partial; OOB lanes masked on store

    out = pl.pallas_call(
        policy_net_kernel,
        out_shape=jax.ShapeDtypeStruct((1, B), jnp.float32),
        grid=grid,
        in_specs=[
            pl.BlockSpec((tb, 4), lambda i: (i, 0)),               # x tile, zero-copy layout
            pl.BlockSpec((_SLAB_ROWS, _LANE), lambda i: (0, 0)),   # packed consts, resident
        ],
        out_specs=pl.BlockSpec((1, tb), lambda i: (0, i)),         # lane-dense output slab
        compiler_params=pltpu.CompilerParams(
            dimension_semantics=("parallel",),   # megacore-shard the batch axis
            vmem_limit_bytes=32 * 1024 * 1024,
        ),
    )(x, wb_slab)

    # [1, B] -> [B, 1] keeps the same linear element order (free layout reinterpretation).
    return out.reshape(B, 1)


def init_params(key):
    """nn.Linear default init U(-1/sqrt(fan_in), 1/sqrt(fan_in)).
    Weights stored PyTorch-style [fan_out, fan_in], biases [fan_out]."""
    dims = [(4, 24), (24, 36), (36, 1)]
    params = []
    keys = jax.random.split(key, 2 * len(dims))
    for i, (fi, fo) in enumerate(dims):
        bound = 1.0 / math.sqrt(float(fi))
        w = jax.random.uniform(keys[2 * i], (fo, fi), jnp.float32, -bound, bound)
        b = jax.random.uniform(keys[2 * i + 1], (fo,), jnp.float32, -bound, bound)
        params += [w, b]
    return tuple(params)


def pack_params(params):
    """Pack the six tiny weight/bias tensors into one (8,128)-aligned f32 [64, 128] slab.
    Done once, host-side; the kernel slices it with static views."""
    w1, b1, w2, b2, w3, b3 = (jnp.asarray(p, jnp.float32) for p in params)
    slab = jnp.zeros((_SLAB_ROWS, _LANE), jnp.float32)
    slab = slab.at[0:24, 0:4].set(w1)
    slab = slab.at[0:24, 4].set(b1)
    slab = slab.at[24:60, 0:24].set(w2)
    slab = slab.at[24:60, 24].set(b2)
    slab = slab.at[0, 40:76].set(w3[0])
    slab = slab.at[0, 76].set(b3[0])
    return slab


def reference_forward(x, params):
    w1, b1, w2, b2, w3, b3 = params
    h1 = jnp.maximum(x @ w1.T + b1, 0.0)
    h2 = jnp.maximum(h1 @ w2.T + b2, 0.0)
    z = jnp.clip(h2 @ w3.T + b3, -10.0, 10.0)
    return jax.nn.sigmoid(z)


if __name__ == "__main__":
    key = jax.random.PRNGKey(0)
    pkey, xkey1, xkey2 = jax.random.split(key, 3)
    params = init_params(pkey)
    wb_slab = pack_params(params)

    # Tolerance is 2e-3 (not 1e-5) so the check is robust to differing default f32 MXU
    # pass counts between the Mosaic in-kernel matmul and XLA's reference matmul.
    TOL = 2e-3

    # Small batch: single grid step, partial block / masked-store path.
    B = 8
    x = jax.random.normal(xkey1, (B, 4), jnp.float32)
    out = policy_net_forward(x, wb_slab)
    jax.block_until_ready(out)
    ref = reference_forward(x, params)
    assert out.shape == (B, 1)
    assert bool(jnp.all(jnp.isfinite(out)))
    assert jnp.allclose(out, ref, atol=TOL, rtol=0.0), float(jnp.max(jnp.abs(out - ref)))

    # Non-multiple-of-128 batch with a multi-step grid: exercises weight residency across
    # steps, the "parallel" megacore split, and the partial trailing block on x and out.
    B2 = 300
    x2 = jax.random.normal(xkey2, (B2, 4), jnp.float32)
    out2 = policy_net_forward(x2, wb_slab)
    jax.block_until_ready(out2)
    ref2 = reference_forward(x2, params)
    assert out2.shape == (B2, 1)
    assert jnp.allclose(out2, ref2, atol=TOL, rtol=0.0), float(jnp.max(jnp.abs(out2 - ref2)))

    print("KERNEL_OK")
</pallas_src>

<mosaic_0001>
module attributes {stable_mosaic.version = 11 : i64} {
  func.func @policy_net_kernel(%arg0: i32, %arg1: memref<128x4xf32, #tpu.memory_space<vmem>>, %arg2: memref<64x128xf32, #tpu.memory_space<vmem>>, %arg3: memref<1x128xf32, #tpu.memory_space<vmem>>) attributes {dimension_semantics = [#tpu.dimension_semantics<parallel>], iteration_bounds = array<i64: 1>, scalar_prefetch = 0 : i64, scratch_operands = 0 : i64, tpu.core_type = #tpu.core_type<tc>, window_params = [{transform_indices = @transform_0, window_bounds = array<i64: 128, 4>}, {pipeline_mode = #tpu.pipeline_mode<synchronous>, transform_indices = @transform_1, window_bounds = array<i64: 64, 128>}, {transform_indices = @transform_2, window_bounds = array<i64: 1, 128>}]} {
    %c0 = arith.constant 0 : index
    %c0_0 = arith.constant 0 : index
    %0 = vector.load %arg2[%c0, %c0_0] : memref<64x128xf32, #tpu.memory_space<vmem>>, vector<24x4xf32>
    %c0_1 = arith.constant 0 : index
    %c4 = arith.constant 4 : index
    %1 = vector.load %arg2[%c0_1, %c4] : memref<64x128xf32, #tpu.memory_space<vmem>>, vector<24x1xf32>
    %c24 = arith.constant 24 : index
    %c0_2 = arith.constant 0 : index
    %2 = vector.load %arg2[%c24, %c0_2] : memref<64x128xf32, #tpu.memory_space<vmem>>, vector<36x24xf32>
    %c24_3 = arith.constant 24 : index
    %c24_4 = arith.constant 24 : index
    %3 = vector.load %arg2[%c24_3, %c24_4] : memref<64x128xf32, #tpu.memory_space<vmem>>, vector<36x1xf32>
    %c0_5 = arith.constant 0 : index
    %c40 = arith.constant 40 : index
    %4 = vector.load %arg2[%c0_5, %c40] : memref<64x128xf32, #tpu.memory_space<vmem>>, vector<1x36xf32>
    %c0_6 = arith.constant 0 : index
    %c76 = arith.constant 76 : index
    %5 = vector.load %arg2[%c0_6, %c76] : memref<64x128xf32, #tpu.memory_space<vmem>>, vector<1x1xf32>
    %c0_7 = arith.constant 0 : index
    %c0_8 = arith.constant 0 : index
    %6 = vector.load %arg1[%c0_7, %c0_8] : memref<128x4xf32, #tpu.memory_space<vmem>>, vector<128x4xf32>
    %cst = arith.constant dense<0.000000e+00> : vector<24x128xf32>
    %7 = tpu.matmul %0, %6, %cst {dimension_numbers = #tpu.dot_dimension_numbers<[1], [1], [0], [0], [0, 0, 1, 0], [], []>} : vector<24x4xf32>, vector<128x4xf32>, vector<24x128xf32> -> vector<24x128xf32>
    %8 = vector.broadcast %1 : vector<24x1xf32> to vector<24x128xf32>
    %9 = arith.addf %7, %8 : vector<24x128xf32>
    %cst_9 = arith.constant 0.000000e+00 : f32
    %10 = vector.broadcast %cst_9 : f32 to vector<24x128xf32>
    %11 = arith.maximumf %9, %10 : vector<24x128xf32>
    %cst_10 = arith.constant dense<0.000000e+00> : vector<36x128xf32>
    %12 = tpu.matmul %2, %11, %cst_10 {dimension_numbers = #tpu.dot_dimension_numbers<[1], [0], [0], [1], [0, 0, 1, 1], [], []>} : vector<36x24xf32>, vector<24x128xf32>, vector<36x128xf32> -> vector<36x128xf32>
    %13 = vector.broadcast %3 : vector<36x1xf32> to vector<36x128xf32>
    %14 = arith.addf %12, %13 : vector<36x128xf32>
    %cst_11 = arith.constant 0.000000e+00 : f32
    %15 = vector.broadcast %cst_11 : f32 to vector<36x128xf32>
    %16 = arith.maximumf %14, %15 : vector<36x128xf32>
    %cst_12 = arith.constant dense<0.000000e+00> : vector<1x128xf32>
    %17 = tpu.matmul %4, %16, %cst_12 {dimension_numbers = #tpu.dot_dimension_numbers<[1], [0], [0], [1], [0, 0, 1, 1], [], []>} : vector<1x36xf32>, vector<36x128xf32>, vector<1x128xf32> -> vector<1x128xf32>
    %18 = vector.broadcast %5 : vector<1x1xf32> to vector<1x128xf32>
    %19 = arith.addf %17, %18 : vector<1x128xf32>
    %cst_13 = arith.constant -1.000000e+01 : f32
    %cst_14 = arith.constant 1.000000e+01 : f32
    %20 = vector.broadcast %cst_13 : f32 to vector<1x128xf32>
    %21 = arith.maximumf %20, %19 : vector<1x128xf32>
    %22 = vector.broadcast %cst_14 : f32 to vector<1x128xf32>
    %23 = arith.minimumf %22, %21 : vector<1x128xf32>
    %cst_15 = arith.constant 5.000000e-01 : f32
    %24 = vector.broadcast %cst_15 : f32 to vector<1x128xf32>
    %25 = arith.mulf %24, %23 : vector<1x128xf32>
    %26 = math.tanh %25 : vector<1x128xf32>
    %cst_16 = arith.constant 1.000000e+00 : f32
    %27 = vector.broadcast %cst_16 : f32 to vector<1x128xf32>
    %28 = arith.addf %26, %27 : vector<1x128xf32>
    %cst_17 = arith.constant 5.000000e-01 : f32
    %29 = vector.broadcast %cst_17 : f32 to vector<1x128xf32>
    %30 = arith.mulf %29, %28 : vector<1x128xf32>
    %c0_18 = arith.constant 0 : index
    %c0_19 = arith.constant 0 : index
    %31 = vector.load %arg3[%c0_18, %c0_19] : memref<1x128xf32, #tpu.memory_space<vmem>>, vector<1x128xf32>
    tpu.vector_store %arg3[%c0_18, %c0_19], %30 {strides = array<i32>} : memref<1x128xf32, #tpu.memory_space<vmem>>, vector<1x128xf32>,
    return
  }
  func.func @transform_0(%arg0: i32) -> (i32, i32) {
    %c0_i32 = arith.constant 0 : i32
    %c0_i32_0 = arith.constant 0 : i32
    return %arg0, %c0_i32 : i32, i32
  }
  func.func @transform_1(%arg0: i32) -> (i32, i32) {
    %c0_i32 = arith.constant 0 : i32
    %c0_i32_0 = arith.constant 0 : i32
    %c0_i32_1 = arith.constant 0 : i32
    return %c0_i32, %c0_i32_0 : i32, i32
  }
  func.func @transform_2(%arg0: i32) -> (i32, i32) {
    %c0_i32 = arith.constant 0 : i32
    %c0_i32_0 = arith.constant 0 : i32
    return %c0_i32, %arg0 : i32, i32
  }
}

</mosaic_0001>

<llo_original>
// kernel: policy_net_forward.1
$region0: #{policy_net_forward.1}
  #allocation0 [shape = 'u32[]', space=smem, size = 0x4, offset = 0x4, fixed_abs, tag = 'smem constant byte address 0x4 - core index']
  #allocation1 [shape = 'u32[144,128]{1,0:T(1,128)}', space=vmem, size = 0x12000, scoped, tag = 'internal scratch']
  %s0 = inlined_call_operand.vmem [shape: f32[8,4], index: 0, kind: input, shape index: {}]
  %s1 = inlined_call_operand.hbm [shape: f32[64,128], index: 1, kind: input, shape index: {}]
  %s2 = inlined_call_operand.hbm [shape: f32[1,8], index: 2, kind: output, shape index: {}]
  %s3 = sld [smem:[#allocation0]]
  $region22: #{policy_net_forward.1} parent=0
    _
  %s5 = ssub.s32 1, %s3
  %s6 = scalar_select 0, %s5, %s3
  $region1: #{policy_net_forward.1} parent=0
    #allocation2 [shape = 'u8[32768]{0}', space=vmem, size = 0x8000, scoped, tag = 'input window, operand 1, single buffered']
    #allocation3 [shape = 's32[1]{0}', space=sflag, size = 0x4, scoped, tag = 'scoped memory for policy_net_forward.1']
    #allocation4 [shape = 's32[1]{0}', space=sflag, size = 0x4, scoped, tag = 'scoped memory for policy_net_forward.1']
    #allocation5 [shape = 'u8[512]{0}', space=vmem, size = 0x400, scoped, tag = 'output window, operand 0, single buffered']
    %7 = vsyncpa [#allocation3], 0
    %8 = vsyncpa [#allocation4], 0
    // Predicated region
    $region2: #{policy_net_forward.1} parent=1 // pred_check
      _
    $region3: #{policy_net_forward.1} parent=1 // pred_check_branch
      %10 = sbr.rel (0) target = $region5
    $region4: #{policy_net_forward.1} parent=1 // pred_region
      _
    $region5: #{policy_net_forward.1} parent=1 // pred_fallthru
      _
    // Predicated region
    $region6: #{policy_net_forward.1} parent=1 // pred_check
      _
    $region7: #{policy_net_forward.1} parent=1 // pred_check_branch
      %12 = sbr.rel (0) target = $region9
    $region8: #{policy_net_forward.1} parent=1 // pred_region
      %s14 = ssub.s32 1024, 1024
      %15 = vsyncadd [#allocation3], %s14
      %s16 = sshll.u32 [#allocation2], 4
      %s17 = int_to_ptr.vmem [resolvable:$true] %s16
      %22 = dma.hbm_to_vmem [thread:$0]  %s1, 1024, %s17, [#allocation3], 128, 128, 8
    $region9: #{policy_net_forward.1} parent=1 // pred_fallthru
      _
    // Predicated region
    $region10: #{policy_net_forward.1} parent=1 // pred_check
      _
    $region11: #{policy_net_forward.1} parent=1 // pred_check_branch
      %24 = sbr.rel (0) target = $region13
    $region12: #{policy_net_forward.1} parent=1 // pred_region
      %25 = dma.done [#allocation3], 1024
    $region13: #{policy_net_forward.1} parent=1 // pred_fallthru
      _
    %v26 = vld [vmem:[#allocation2] sm:$0xff]
    %v27 = vld [vmem:[#allocation2 + $0x8] sm:$0xff]
    %v28 = vld [vmem:[#allocation2 + $0x10] sm:$0xff]
    %v29 = vld [vmem:[#allocation2 + $0x18] sm:$0xff]
    %v30 = vld [vmem:[#allocation2 + $0x20] sm:$0xff]
    %v31 = vld [vmem:[#allocation2 + $0x28] sm:$0xff]
    %v32 = vld [vmem:[#allocation2 + $0x30] sm:$0xff]
    %v33 = vld [vmem:[#allocation2 + $0x38] sm:$0xf]
    %v34 = vld [vmem:[#allocation2] sm:$0x1]
    %v35 = vld [vmem:[%s0] sm:$0xff]
    %v36 = vld [vmem:[%s0 + $0x8] sm:$0xff]
    %v37 = vld [vmem:[%s0 + $0x10] sm:$0xff]
    %v38 = vld [vmem:[%s0 + $0x18] sm:$0xff]
    %v39 = vld [vmem:[%s0 + $0x20] sm:$0xff]
    %v40 = vld [vmem:[%s0 + $0x28] sm:$0xff]
    %v41 = vld [vmem:[%s0 + $0x30] sm:$0xff]
    %v42 = vld [vmem:[%s0 + $0x38] sm:$0xff]
    %v43 = vld [vmem:[%s0 + $0x40] sm:$0xff]
    %v44 = vld [vmem:[%s0 + $0x48] sm:$0xff]
    %v45 = vld [vmem:[%s0 + $0x50] sm:$0xff]
    %v46 = vld [vmem:[%s0 + $0x58] sm:$0xff]
    %v47 = vld [vmem:[%s0 + $0x60] sm:$0xff]
    %v48 = vld [vmem:[%s0 + $0x68] sm:$0xff]
    %v49 = vld [vmem:[%s0 + $0x70] sm:$0xff]
    %v50 = vld [vmem:[%s0 + $0x78] sm:$0xff]
    %52 = vset.pattern.permute.xlu0 4
    %53 = vperm.xlu0 %52, %v26
    %v54 = vpop.permute.xlu0 %53
    %57 = vset.pattern.permute.xlu0 4
    %58 = vperm.xlu0 %57, %v27
    %v59 = vpop.permute.xlu0 %58
    %62 = vset.pattern.permute.xlu0 4
    %63 = vperm.xlu0 %62, %v28
    %v64 = vpop.permute.xlu0 %63
    %vm66 = vcmask 31744
    %v67 = vsel %vm66, %v26, 0
    %v69 = vsel %vm66, %v27, 0
    %v71 = vsel %vm66, %v28, 0
    %v74 = vsel %vm66, %v35, 0
    %v77 = vsel %vm66, %v36, 0
    %v80 = vsel %vm66, %v37, 0
    %v83 = vsel %vm66, %v38, 0
    %v86 = vsel %vm66, %v39, 0
    %v89 = vsel %vm66, %v40, 0
    %v92 = vsel %vm66, %v41, 0
    %v95 = vsel %vm66, %v42, 0
    %v98 = vsel %vm66, %v43, 0
    %v101 = vsel %vm66, %v44, 0
    %v104 = vsel %vm66, %v45, 0
    %v107 = vsel %vm66, %v46, 0
    %v110 = vsel %vm66, %v47, 0
    %v113 = vsel %vm66, %v48, 0
    %v116 = vsel %vm66, %v49, 0
    %v119 = vsel %vm66, %v50, 0
    %121 = vmatprep.subr.mxu0 0.0
    %122 = vmatpush1.xpose.msra.mxu0 %v74
    %123 = vmatprep.subr.mxu0 0.0
    %124 = vmatpush1.xpose.msra.mxu0 %v77
    %125 = vmatprep.subr.mxu0 0.0
    %126 = vmatpush1.xpose.msra.mxu0 %v80
    %127 = vmatprep.subr.mxu0 0.0
    %128 = vmatpush1.xpose.msra.mxu0 %v83
    %129 = vmatprep.subr.mxu0 0.0
    %130 = vmatpush1.xpose.msra.mxu0 %v86
    %131 = vmatprep.subr.mxu0 0.0
    %132 = vmatpush1.xpose.msra.mxu0 %v89
    %133 = vmatprep.subr.mxu0 0.0
    %134 = vmatpush1.xpose.msra.mxu0 %v92
    %135 = vmatprep.subr.mxu0 0.0
    %136 = vmatpush1.xpose.msra.mxu0 %v95
    %137 = vmatprep.subr.mxu0 0.0
    %138 = vmatpush1.xpose.msra.mxu0 %v98
    %139 = vmatprep.subr.mxu0 0.0
    %140 = vmatpush1.xpose.msra.mxu0 %v101
    %141 = vmatprep.subr.mxu0 0.0
    %142 = vmatpush1.xpose.msra.mxu0 %v104
    %143 = vmatprep.subr.mxu0 0.0
    %144 = vmatpush1.xpose.msra.mxu0 %v107
    %145 = vmatprep.subr.mxu0 0.0
    %146 = vmatpush1.xpose.msra.mxu0 %v110
    %147 = vmatprep.subr.mxu0 0.0
    %148 = vmatpush1.xpose.msra.mxu0 %v113
    %149 = vmatprep.subr.mxu0 0.0
    %150 = vmatpush1.xpose.msra.mxu0 %v116
    %151 = vmatprep.subr.mxu0 0.0
    %152 = vmatpush1.xpose.msra.mxu0 %v119
    %153 = vmatprep.subr.mxu0 0.0
    %154 = vmatpush1.xpose.msra.mxu0 0.0
    %155 = vmatprep.subr.mxu0 0.0
    %156 = vmatpush1.xpose.msra.mxu0 0.0
    %157 = vmatprep.subr.mxu0 0.0
    %158 = vmatpush1.xpose.msra.mxu0 0.0
    %159 = vmatprep.subr.mxu0 0.0
    %160 = vmatpush1.xpose.msra.mxu0 0.0
    %161 = vmatprep.subr.mxu0 0.0
    %162 = vmatpush1.xpose.msra.mxu0 0.0
    %163 = vmatprep.subr.mxu0 0.0
    %164 = vmatpush1.xpose.msra.mxu0 0.0
    %165 = vmatprep.subr.mxu0 0.0
    %166 = vmatpush1.xpose.msra.mxu0 0.0
    %167 = vmatprep.subr.mxu0 0.0
    %168 = vmatpush1.xpose.msra.mxu0 0.0
    %169 = vmatprep.subr.mxu0 0.0
    %170 = vmatpush1.xpose.msra.mxu0 0.0
    %171 = vmatprep.subr.mxu0 0.0
    %172 = vmatpush1.xpose.msra.mxu0 0.0
    %173 = vmatprep.subr.mxu0 0.0
    %174 = vmatpush1.xpose.msra.mxu0 0.0
    %175 = vmatprep.subr.mxu0 0.0
    %176 = vmatpush1.xpose.msra.mxu0 0.0
    %177 = vmatprep.subr.mxu0 0.0
    %178 = vmatpush1.xpose.msra.mxu0 0.0
    %179 = vmatprep.subr.mxu0 0.0
    %180 = vmatpush1.xpose.msra.mxu0 0.0
    %181 = vmatprep.subr.mxu0 0.0
    %182 = vmatpush1.xpose.msra.mxu0 0.0
    %183 = vmatprep.subr.mxu0 0.0
    %184 = vmatpush1.xpose.msra.mxu0 0.0
    %185 = vmatprep.mubr.f32.mxu0 0.0
    %186 = vmatmul.mubr.f32.gmra.mrb[0].mxu0 %v67
    %v187 = vpop.f32.mrb[0].mxu0
    %v188 = vadd.f32 %v54, %v187
    %v189 = vpop.f32.mrb[0].mxu0
    %190 = vmatprep.mubr.f32.mxu0 0.0
    %191 = vmatmul.mubr.f32.gmra.mrb[0].mxu0 %v69
    %v192 = vpop.f32.mrb[0].mxu0
    %v193 = vadd.f32 %v59, %v192
    %v194 = vpop.f32.mrb[0].mxu0
    %195 = vmatprep.mubr.f32.mxu0 0.0
    %196 = vmatmul.mubr.f32.gmra.mrb[0].mxu0 %v71
    %v197 = vpop.f32.mrb[0].mxu0
    %v198 = vadd.f32 %v64, %v197
    %v199 = vpop.f32.mrb[0].mxu0
    %200 = vdwg.mxu0
    %v201 = vmax.f32 %v188, 0.0
    %v202 = vmax.f32 %v193, 0.0
    %v203 = vmax.f32 %v198, 0.0
    %205 = vset.pattern.permute.xlu0 24
    %206 = vperm.xlu0 %205, %v29
    %v207 = vpop.permute.xlu0 %206
    %210 = vset.pattern.permute.xlu0 24
    %211 = vperm.xlu0 %210, %v30
    %v212 = vpop.permute.xlu0 %211
    %215 = vset.pattern.permute.xlu0 24
    %216 = vperm.xlu0 %215, %v31
    %v217 = vpop.permute.xlu0 %216
    %220 = vset.pattern.permute.xlu0 24
    %221 = vperm.xlu0 %220, %v32
    %v222 = vpop.permute.xlu0 %221
    %225 = vset.pattern.permute.xlu0 24
    %226 = vperm.xlu0 %225, %v33
    %v227 = vpop.permute.xlu0 %226
    %vm229 = vcmask 195584
    %v230 = vsel %vm229, %v29, 0
    %v232 = vsel %vm229, %v30, 0
    %v234 = vsel %vm229, %v31, 0
    %v236 = vsel %vm229, %v32, 0
    %v238 = vsel %vm229, %v33, 0
    %240 = vmatprep.subr.mxu0 0.0
    %241 = vmatpush1.msra.mxu0 %v201
    %242 = vmatprep.subr.mxu0 0.0
    %243 = vmatpush1.msra.mxu0 %v202
    %244 = vmatprep.subr.mxu0 0.0
    %245 = vmatpush1.msra.mxu0 %v203
    %246 = vmatprep.subr.mxu0 0.0
    %247 = vmatpush1.msra.mxu0 0.0
    %248 = vmatprep.subr.mxu0 0.0
    %249 = vmatpush1.msra.mxu0 0.0
    %250 = vmatprep.subr.mxu0 0.0
    %251 = vmatpush1.msra.mxu0 0.0
    %252 = vmatprep.subr.mxu0 0.0
    %253 = vmatpush1.msra.mxu0 0.0
    %254 = vmatprep.subr.mxu0 0.0
    %255 = vmatpush1.msra.mxu0 0.0
    %256 = vmatprep.subr.mxu0 0.0
    %257 = vmatpush1.msra.mxu0 0.0
    %258 = vmatprep.subr.mxu0 0.0
    %259 = vmatpush1.msra.mxu0 0.0
    %260 = vmatprep.subr.mxu0 0.0
    %261 = vmatpush1.msra.mxu0 0.0
    %262 = vmatprep.subr.mxu0 0.0
    %263 = vmatpush1.msra.mxu0 0.0
    %264 = vmatprep.subr.mxu0 0.0
    %265 = vmatpush1.msra.mxu0 0.0
    %266 = vmatprep.subr.mxu0 0.0
    %267 = vmatpush1.msra.mxu0 0.0
    %268 = vmatprep.subr.mxu0 0.0
    %269 = vmatpush1.msra.mxu0 0.0
    %270 = vmatprep.subr.mxu0 0.0
    %271 = vmatpush1.msra.mxu0 0.0
    %272 = vmatprep.subr.mxu0 0.0
    %273 = vmatpush1.msra.mxu0 0.0
    %274 = vmatprep.subr.mxu0 0.0
    %275 = vmatpush1.msra.mxu0 0.0
    %276 = vmatprep.subr.mxu0 0.0
    %277 = vmatpush1.msra.mxu0 0.0
    %278 = vmatprep.subr.mxu0 0.0
    %279 = vmatpush1.msra.mxu0 0.0
    %280 = vmatprep.subr.mxu0 0.0
    %281 = vmatpush1.msra.mxu0 0.0
    %282 = vmatprep.subr.mxu0 0.0
    %283 = vmatpush1.msra.mxu0 0.0
    %284 = vmatprep.subr.mxu0 0.0
    %285 = vmatpush1.msra.mxu0 0.0
    %286 = vmatprep.subr.mxu0 0.0
    %287 = vmatpush1.msra.mxu0 0.0
    %288 = vmatprep.subr.mxu0 0.0
    %289 = vmatpush1.msra.mxu0 0.0
    %290 = vmatprep.subr.mxu0 0.0
    %291 = vmatpush1.msra.mxu0 0.0
    %292 = vmatprep.subr.mxu0 0.0
    %293 = vmatpush1.msra.mxu0 0.0
    %294 = vmatprep.subr.mxu0 0.0
    %295 = vmatpush1.msra.mxu0 0.0
    %296 = vmatprep.subr.mxu0 0.0
    %297 = vmatpush1.msra.mxu0 0.0
    %298 = vmatprep.subr.mxu0 0.0
    %299 = vmatpush1.msra.mxu0 0.0
    %300 = vmatprep.subr.mxu0 0.0
    %301 = vmatpush1.msra.mxu0 0.0
    %302 = vmatprep.subr.mxu0 0.0
    %303 = vmatpush1.msra.mxu0 0.0
    %304 = vmatprep.mubr.f32.mxu0 0.0
    %305 = vmatmul.mubr.f32.gmra.mrb[0].mxu0 %v230
    %v306 = vpop.f32.mrb[0].mxu0
    %v307 = vadd.f32 %v207, %v306
    %v308 = vpop.f32.mrb[0].mxu0
    %309 = vmatprep.mubr.f32.mxu0 0.0
    %310 = vmatmul.mubr.f32.gmra.mrb[0].mxu0 %v232
    %v311 = vpop.f32.mrb[0].mxu0
    %v312 = vadd.f32 %v212, %v311
    %v313 = vpop.f32.mrb[0].mxu0
    %314 = vmatprep.mubr.f32.mxu0 0.0
    %315 = vmatmul.mubr.f32.gmra.mrb[0].mxu0 %v234
    %v316 = vpop.f32.mrb[0].mxu0
    %v317 = vadd.f32 %v217, %v316
    %v318 = vpop.f32.mrb[0].mxu0
    %319 = vmatprep.mubr.f32.mxu0 0.0
    %320 = vmatmul.mubr.f32.gmra.mrb[0].mxu0 %v236
    %v321 = vpop.f32.mrb[0].mxu0
    %v322 = vadd.f32 %v222, %v321
    %v323 = vpop.f32.mrb[0].mxu0
    %324 = vmatprep.mubr.f32.mxu0 0.0
    %325 = vmatmul.mubr.f32.gmra.mrb[0].mxu0 %v238
    %v326 = vpop.f32.mrb[0].mxu0
    %v327 = vadd.f32 %v227, %v326
    %v328 = vpop.f32.mrb[0].mxu0
    %329 = vdwg.mxu0
    %v330 = vmax.f32 %v307, 0.0
    %v331 = vmax.f32 %v312, 0.0
    %v332 = vmax.f32 %v317, 0.0
    %v333 = vmax.f32 %v322, 0.0
    %v334 = vmax.f32 %v327, 0.0
    %336 = vset.pattern.permute.xlu0 76
    %337 = vperm.xlu0 %336, %v34
    %v338 = vpop.permute.xlu0 %337
    %340 = vrot.lane.b32.xlu0 %v34, 88
    %v341 = vpop.permute.xlu0 %340
    %vm342 = vcmask 293888
    %v343 = vsel %vm342, %v341, 0
    %vm345 = vcmask 1043456
    %v347 = vsel %vm345, %v334, 0
    %349 = vmatprep.subr.mxu0 0.0
    %350 = vmatpush1.msra.mxu0 %v330
    %351 = vmatprep.subr.mxu0 0.0
    %352 = vmatpush1.msra.mxu0 %v331
    %353 = vmatprep.subr.mxu0 0.0
    %354 = vmatpush1.msra.mxu0 %v332
    %355 = vmatprep.subr.mxu0 0.0
    %356 = vmatpush1.msra.mxu0 %v333
    %357 = vmatprep.subr.mxu0 0.0
    %358 = vmatpush1.msra.mxu0 %v347
    %359 = vmatprep.subr.mxu0 0.0
    %360 = vmatpush1.msra.mxu0 0.0
    %361 = vmatprep.subr.mxu0 0.0
    %362 = vmatpush1.msra.mxu0 0.0
    %363 = vmatprep.subr.mxu0 0.0
    %364 = vmatpush1.msra.mxu0 0.0
    %365 = vmatprep.subr.mxu0 0.0
    %366 = vmatpush1.msra.mxu0 0.0
    %367 = vmatprep.subr.mxu0 0.0
    %368 = vmatpush1.msra.mxu0 0.0
    %369 = vmatprep.subr.mxu0 0.0
    %370 = vmatpush1.msra.mxu0 0.0
    %371 = vmatprep.subr.mxu0 0.0
    %372 = vmatpush1.msra.mxu0 0.0
    %373 = vmatprep.subr.mxu0 0.0
    %374 = vmatpush1.msra.mxu0 0.0
    %375 = vmatprep.subr.mxu0 0.0
    %376 = vmatpush1.msra.mxu0 0.0
    %377 = vmatprep.subr.mxu0 0.0
    %378 = vmatpush1.msra.mxu0 0.0
    %379 = vmatprep.subr.mxu0 0.0
    %380 = vmatpush1.msra.mxu0 0.0
    %381 = vmatprep.subr.mxu0 0.0
    %382 = vmatpush1.msra.mxu0 0.0
    %383 = vmatprep.subr.mxu0 0.0
    %384 = vmatpush1.msra.mxu0 0.0
    %385 = vmatprep.subr.mxu0 0.0
    %386 = vmatpush1.msra.mxu0 0.0
    %387 = vmatprep.subr.mxu0 0.0
    %388 = vmatpush1.msra.mxu0 0.0
    %389 = vmatprep.subr.mxu0 0.0
    %390 = vmatpush1.msra.mxu0 0.0
    %391 = vmatprep.subr.mxu0 0.0
    %392 = vmatpush1.msra.mxu0 0.0
    %393 = vmatprep.subr.mxu0 0.0
    %394 = vmatpush1.msra.mxu0 0.0
    %395 = vmatprep.subr.mxu0 0.0
    %396 = vmatpush1.msra.mxu0 0.0
    %397 = vmatprep.subr.mxu0 0.0
    %398 = vmatpush1.msra.mxu0 0.0
    %399 = vmatprep.subr.mxu0 0.0
    %400 = vmatpush1.msra.mxu0 0.0
    %401 = vmatprep.subr.mxu0 0.0
    %402 = vmatpush1.msra.mxu0 0.0
    %403 = vmatprep.subr.mxu0 0.0
    %404 = vmatpush1.msra.mxu0 0.0
    %405 = vmatprep.subr.mxu0 0.0
    %406 = vmatpush1.msra.mxu0 0.0
    %407 = vmatprep.subr.mxu0 0.0
    %408 = vmatpush1.msra.mxu0 0.0
    %409 = vmatprep.subr.mxu0 0.0
    %410 = vmatpush1.msra.mxu0 0.0
    %411 = vmatprep.subr.mxu0 0.0
    %412 = vmatpush1.msra.mxu0 0.0
    %413 = vmatprep.mubr.f32.mxu0 0.0
    %414 = vmatmul.mubr.f32.gmra.mrb[0].mxu0 %v343
    %v415 = vpop.f32.mrb[0].mxu0
    %v416 = vadd.f32 %v338, %v415
    %v417 = vpop.f32.mrb[0].mxu0
    %418 = vdwg.mxu0
    %v419 = vmax.f32 %v416, -10.0
    %v420 = vmin.f32 %v419, 10.0
    %v421 = vmul.f32 %v420, 0.5
    %v422 = vtanh.pop %v421
    %v423 = vadd.f32 %v422, 1.0
    %v424 = vmul.f32 %v423, 0.5
    %425 = vst [vmem:[#allocation5] sm:$0x1] %v424
    // Predicated region
    $region14: #{policy_net_forward.1} parent=1 // pred_check
      _
    $region15: #{policy_net_forward.1} parent=1 // pred_check_branch
      %427 = sbr.rel (0) target = $region17
    $region16: #{policy_net_forward.1} parent=1 // pred_region
      %s429 = ssub.s32 16, 16
      %430 = vsyncadd [#allocation4], %s429
      %s432 = sshll.u32 [#allocation5], 4
      %s433 = int_to_ptr.vmem [resolvable:$true] %s432
      %435 = dma.vmem_to_hbm [thread:$0]  %s433, 16, %s2, [#allocation4]
    $region17: #{policy_net_forward.1} parent=1 // pred_fallthru
      _
    // Predicated region
    $region18: #{policy_net_forward.1} parent=1 // pred_check
      _
    $region19: #{policy_net_forward.1} parent=1 // pred_check_branch
      %437 = sbr.rel (0) target = $region21
    $region20: #{policy_net_forward.1} parent=1 // pred_region
      %438 = dma.done [#allocation4], 16
    $region21: #{policy_net_forward.1} parent=1 // pred_fallthru
      _
    %439 = vsyncpa [#allocation3], 1
    %440 = vsyncpa [#allocation4], 1

</llo_original>
